<compile_context>
chip_gen: v6e
topology: v6e:2x2x1
jax: 0.10.0
libtpu: 0.0.40
codegen_flags: <defaults>
</compile_context>

<pallas_src>
import jax
import jax.numpy as jnp
from jax.experimental import pallas as pl
from jax.experimental.pallas import tpu as pltpu

NEG_SLOPE = 0.01  # nn.LeakyReLU default


def _leaky_relu(x):
    return jnp.where(x > 0, x, NEG_SLOPE * x)


def _round_up(x, m):
    return (x + m - 1) // m * m


def critic_kernel(s_ref, a_ref,
                  w1s_ref, w1a_ref, b1_ref,
                  w2_ref, b2_ref,
                  w3_ref, b3_ref,
                  q_ref):
    # Layer 1: split-K matmul replaces the [state | action] concat.
    h = (jnp.dot(s_ref[...], w1s_ref[...], preferred_element_type=jnp.float32)
         + jnp.dot(a_ref[...], w1a_ref[...], preferred_element_type=jnp.float32)
         + b1_ref[...])
    h = _leaky_relu(h)
    # Layer 2: block-diagonal (2H, 2H) -> both heads in one 128-lane matmul.
    h = jnp.dot(h, w2_ref[...], preferred_element_type=jnp.float32) + b2_ref[...]
    h = _leaky_relu(h)
    # Layer 3: block-diagonal (2H, 2) -> combined (TM, 2) output [q1 | q2].
    q_ref[...] = (jnp.dot(h, w3_ref[...], preferred_element_type=jnp.float32)
                  + b3_ref[...])


def critic_forward(state, action, packed, features, actions, hidden,
                   tm_max=1024):
    """Returns (q1, q2), each (B, 1, 1), matching the PyTorch module."""
    w1s, w1a, b1, w2, b2, w3, b3 = packed

    s = state.reshape(-1, features).astype(jnp.float32)
    a = action.reshape(-1, actions).astype(jnp.float32)
    B = s.shape[0]

    # Row tile: multiple of 8, capped at tm_max; pad batch to a multiple of it.
    TM = min(tm_max, _round_up(B, 8))
    B_pad = _round_up(B, TM)
    if B_pad != B:
        s = jnp.pad(s, ((0, B_pad - B), (0, 0)))
        a = jnp.pad(a, ((0, B_pad - B), (0, 0)))

    grid = (B_pad // TM,)
    const2 = lambda i: (0, 0)   # weights/biases: same block every grid step
    two_h = 2 * hidden

    flops = 2 * B_pad * (features * two_h + actions * two_h
                         + two_h * two_h + two_h * 2)
    bytes_accessed = (B_pad * (features + actions + 2) * 4
                      + sum(int(p.size) * 4 for p in packed))

    q = pl.pallas_call(
        critic_kernel,
        out_shape=jax.ShapeDtypeStruct((B_pad, 2), jnp.float32),
        grid=grid,
        in_specs=[
            pl.BlockSpec((TM, features), lambda i: (i, 0)),   # state tile
            pl.BlockSpec((TM, actions), lambda i: (i, 0)),    # action tile
            pl.BlockSpec(w1s.shape, const2),
            pl.BlockSpec(w1a.shape, const2),
            pl.BlockSpec(b1.shape, const2),
            pl.BlockSpec(w2.shape, const2),
            pl.BlockSpec(b2.shape, const2),
            pl.BlockSpec(w3.shape, const2),
            pl.BlockSpec(b3.shape, const2),
        ],
        out_specs=pl.BlockSpec((TM, 2), lambda i: (i, 0)),
        compiler_params=pltpu.CompilerParams(
            dimension_semantics=("parallel",),
            vmem_limit_bytes=32 * 1024 * 1024,
        ),
        cost_estimate=pl.CostEstimate(
            flops=flops, transcendentals=0, bytes_accessed=bytes_accessed),
    )(s, a, w1s, w1a, b1, w2, b2, w3, b3)

    q = q[:B]
    # .unsqueeze(1) in the PyTorch forward
    return q[:, 0:1][:, None, :], q[:, 1:2][:, None, :]


def init_params(key, features, actions, hidden):
    """Per-head params mirroring nn.Linear shapes; weights stored (in, out)."""
    in_dim = features + actions

    def linear(key, fan_in, fan_out):
        kw, kb = jax.random.split(key)
        bound = 1.0 / jnp.sqrt(fan_in)
        w = jax.random.uniform(kw, (fan_in, fan_out), jnp.float32, -bound, bound)
        b = jax.random.uniform(kb, (1, fan_out), jnp.float32, -bound, bound)
        return w, b

    keys = jax.random.split(key, 6)
    w1a, b1a = linear(keys[0], in_dim, hidden)
    w2a, b2a = linear(keys[1], hidden, hidden)
    w3a, b3a = linear(keys[2], hidden, 1)
    w1b, b1b = linear(keys[3], in_dim, hidden)
    w2b, b2b = linear(keys[4], hidden, hidden)
    w3b, b3b = linear(keys[5], hidden, 1)
    return (w1a, b1a, w2a, b2a, w3a, b3a,
            w1b, b1b, w2b, b2b, w3b, b3b)


def pack_params(params, features, actions, hidden):
    """Fuse the two heads into one 128-wide MLP (block-diagonal layers 2/3)."""
    (w1a_, b1a_, w2a_, b2a_, w3a_, b3a_,
     w1b_, b1b_, w2b_, b2b_, w3b_, b3b_) = params

    # Layer 1: heads concatenated along the output axis, then split on K at
    # the state/action boundary (so the kernel never needs the X concat).
    w1 = jnp.concatenate([w1a_, w1b_], axis=1)       # (in_dim, 2H)
    w1_state = w1[:features]                          # (features, 2H)
    w1_action = w1[features:]                         # (actions, 2H)
    b1 = jnp.concatenate([b1a_, b1b_], axis=1)        # (1, 2H)

    # Layer 2: block-diagonal so each head only mixes its own hidden units.
    zero = jnp.zeros((hidden, hidden), jnp.float32)
    w2 = jnp.concatenate(
        [jnp.concatenate([w2a_, zero], axis=1),
         jnp.concatenate([zero, w2b_], axis=1)], axis=0)   # (2H, 2H)
    b2 = jnp.concatenate([b2a_, b2b_], axis=1)             # (1, 2H)

    # Layer 3: block-diagonal (2H, 2) -> columns [q1, q2].
    zcol = jnp.zeros((hidden, 1), jnp.float32)
    w3 = jnp.concatenate(
        [jnp.concatenate([w3a_, zcol], axis=1),
         jnp.concatenate([zcol, w3b_], axis=1)], axis=0)   # (2H, 2)
    b3 = jnp.concatenate([b3a_, b3b_], axis=1)             # (1, 2)

    return (w1_state, w1_action, b1, w2, b2, w3, b3)


def reference_forward(state, action, params, features, actions):
    """Pure-JAX reference on the unfused per-head params."""
    (w1a, b1a, w2a, b2a, w3a, b3a,
     w1b, b1b, w2b, b2b, w3b, b3b) = params
    x = jnp.concatenate(
        [state.reshape(-1, features).astype(jnp.float32),
         action.reshape(-1, actions).astype(jnp.float32)], axis=1)

    def mlp(w1, b1, w2, b2, w3, b3):
        h = _leaky_relu(x @ w1 + b1)
        h = _leaky_relu(h @ w2 + b2)
        return h @ w3 + b3

    q1 = mlp(w1a, b1a, w2a, b2a, w3a, b3a)
    q2 = mlp(w1b, b1b, w2b, b2b, w3b, b3b)
    return q1[:, None, :], q2[:, None, :]


if __name__ == "__main__":
    # state_dim = (B, features), action_dim = (B, actions), hidden = 64
    B, FEATURES, ACTIONS, HIDDEN = 2, 12, 4, 64

    key = jax.random.PRNGKey(0)
    k_params, k_state, k_action = jax.random.split(key, 3)

    params = init_params(k_params, FEATURES, ACTIONS, HIDDEN)
    packed = pack_params(params, FEATURES, ACTIONS, HIDDEN)

    state = jax.random.normal(k_state, (B, FEATURES), jnp.float32)
    action = jax.random.normal(k_action, (B, ACTIONS), jnp.float32)

    q1, q2 = critic_forward(state, action, packed, FEATURES, ACTIONS, HIDDEN)
    q1 = jax.block_until_ready(q1)
    q2 = jax.block_until_ready(q2)
    assert q1.shape == (B, 1, 1) and q2.shape == (B, 1, 1)

    r1, r2 = reference_forward(state, action, params, FEATURES, ACTIONS)
    assert jnp.allclose(q1, r1, atol=1e-4, rtol=1e-4)
    assert jnp.allclose(q2, r2, atol=1e-4, rtol=1e-4)

    # Also exercise batch padding + a multi-step "parallel" grid (TM=128).
    B2 = 300
    ks2, ka2 = jax.random.split(jax.random.PRNGKey(1))
    state2 = jax.random.normal(ks2, (B2, FEATURES), jnp.float32)
    action2 = jax.random.normal(ka2, (B2, ACTIONS), jnp.float32)
    q1b, q2b = critic_forward(state2, action2, packed, FEATURES, ACTIONS,
                              HIDDEN, tm_max=128)
    q1b = jax.block_until_ready(q1b)
    q2b = jax.block_until_ready(q2b)
    r1b, r2b = reference_forward(state2, action2, params, FEATURES, ACTIONS)
    assert jnp.allclose(q1b, r1b, atol=1e-4, rtol=1e-4)
    assert jnp.allclose(q2b, r2b, atol=1e-4, rtol=1e-4)

    print("KERNEL_OK")
</pallas_src>

<mosaic_0001>
module attributes {stable_mosaic.version = 11 : i64} {
  func.func @critic_kernel(%arg0: i32, %arg1: memref<8x12xf32, #tpu.memory_space<vmem>>, %arg2: memref<8x4xf32, #tpu.memory_space<vmem>>, %arg3: memref<12x128xf32, #tpu.memory_space<vmem>>, %arg4: memref<4x128xf32, #tpu.memory_space<vmem>>, %arg5: memref<1x128xf32, #tpu.memory_space<vmem>>, %arg6: memref<128x128xf32, #tpu.memory_space<vmem>>, %arg7: memref<1x128xf32, #tpu.memory_space<vmem>>, %arg8: memref<128x2xf32, #tpu.memory_space<vmem>>, %arg9: memref<1x2xf32, #tpu.memory_space<vmem>>, %arg10: memref<8x2xf32, #tpu.memory_space<vmem>>) attributes {dimension_semantics = [#tpu.dimension_semantics<parallel>], iteration_bounds = array<i64: 1>, scalar_prefetch = 0 : i64, scratch_operands = 0 : i64, tpu.core_type = #tpu.core_type<tc>, window_params = [{transform_indices = @transform_0, window_bounds = array<i64: 8, 12>}, {transform_indices = @transform_1, window_bounds = array<i64: 8, 4>}, {pipeline_mode = #tpu.pipeline_mode<synchronous>, transform_indices = @transform_2, window_bounds = array<i64: 12, 128>}, {pipeline_mode = #tpu.pipeline_mode<synchronous>, transform_indices = @transform_3, window_bounds = array<i64: 4, 128>}, {pipeline_mode = #tpu.pipeline_mode<synchronous>, transform_indices = @transform_4, window_bounds = array<i64: 1, 128>}, {pipeline_mode = #tpu.pipeline_mode<synchronous>, transform_indices = @transform_5, window_bounds = array<i64: 128, 128>}, {pipeline_mode = #tpu.pipeline_mode<synchronous>, transform_indices = @transform_6, window_bounds = array<i64: 1, 128>}, {pipeline_mode = #tpu.pipeline_mode<synchronous>, transform_indices = @transform_7, window_bounds = array<i64: 128, 2>}, {pipeline_mode = #tpu.pipeline_mode<synchronous>, transform_indices = @transform_8, window_bounds = array<i64: 1, 2>}, {transform_indices = @transform_9, window_bounds = array<i64: 8, 2>}]} {
    %c0 = arith.constant 0 : index
    %c0_0 = arith.constant 0 : index
    %0 = vector.load %arg1[%c0, %c0_0] : memref<8x12xf32, #tpu.memory_space<vmem>>, vector<8x12xf32>
    %c0_1 = arith.constant 0 : index
    %c0_2 = arith.constant 0 : index
    %1 = vector.load %arg3[%c0_1, %c0_2] : memref<12x128xf32, #tpu.memory_space<vmem>>, vector<12x128xf32>
    %cst = arith.constant dense<0.000000e+00> : vector<8x128xf32>
    %2 = tpu.matmul %0, %1, %cst {dimension_numbers = #tpu.dot_dimension_numbers<[1], [0], [0], [1], [0, 0, 1, 1], [], []>} : vector<8x12xf32>, vector<12x128xf32>, vector<8x128xf32> -> vector<8x128xf32>
    %c0_3 = arith.constant 0 : index
    %c0_4 = arith.constant 0 : index
    %3 = vector.load %arg2[%c0_3, %c0_4] : memref<8x4xf32, #tpu.memory_space<vmem>>, vector<8x4xf32>
    %c0_5 = arith.constant 0 : index
    %c0_6 = arith.constant 0 : index
    %4 = vector.load %arg4[%c0_5, %c0_6] : memref<4x128xf32, #tpu.memory_space<vmem>>, vector<4x128xf32>
    %cst_7 = arith.constant dense<0.000000e+00> : vector<8x128xf32>
    %5 = tpu.matmul %3, %4, %cst_7 {dimension_numbers = #tpu.dot_dimension_numbers<[1], [0], [0], [1], [0, 0, 1, 1], [], []>} : vector<8x4xf32>, vector<4x128xf32>, vector<8x128xf32> -> vector<8x128xf32>
    %6 = arith.addf %2, %5 : vector<8x128xf32>
    %c0_8 = arith.constant 0 : index
    %c0_9 = arith.constant 0 : index
    %7 = vector.load %arg5[%c0_8, %c0_9] : memref<1x128xf32, #tpu.memory_space<vmem>>, vector<1x128xf32>
    %8 = vector.broadcast %7 : vector<1x128xf32> to vector<8x128xf32>
    %9 = arith.addf %6, %8 : vector<8x128xf32>
    %cst_10 = arith.constant 0.000000e+00 : f32
    %10 = vector.broadcast %cst_10 : f32 to vector<8x128xf32>
    %11 = arith.cmpf ogt, %9, %10 : vector<8x128xf32>
    %cst_11 = arith.constant 0.00999999977 : f32
    %12 = vector.broadcast %cst_11 : f32 to vector<8x128xf32>
    %13 = arith.mulf %12, %9 : vector<8x128xf32>
    %14 = arith.select %11, %9, %13 : vector<8x128xi1>, vector<8x128xf32>
    %c0_12 = arith.constant 0 : index
    %c0_13 = arith.constant 0 : index
    %15 = vector.load %arg6[%c0_12, %c0_13] : memref<128x128xf32, #tpu.memory_space<vmem>>, vector<128x128xf32>
    %cst_14 = arith.constant dense<0.000000e+00> : vector<8x128xf32>
    %16 = tpu.matmul %14, %15, %cst_14 {dimension_numbers = #tpu.dot_dimension_numbers<[1], [0], [0], [1], [0, 0, 1, 1], [], []>} : vector<8x128xf32>, vector<128x128xf32>, vector<8x128xf32> -> vector<8x128xf32>
    %c0_15 = arith.constant 0 : index
    %c0_16 = arith.constant 0 : index
    %17 = vector.load %arg7[%c0_15, %c0_16] : memref<1x128xf32, #tpu.memory_space<vmem>>, vector<1x128xf32>
    %18 = vector.broadcast %17 : vector<1x128xf32> to vector<8x128xf32>
    %19 = arith.addf %16, %18 : vector<8x128xf32>
    %cst_17 = arith.constant 0.000000e+00 : f32
    %20 = vector.broadcast %cst_17 : f32 to vector<8x128xf32>
    %21 = arith.cmpf ogt, %19, %20 : vector<8x128xf32>
    %cst_18 = arith.constant 0.00999999977 : f32
    %22 = vector.broadcast %cst_18 : f32 to vector<8x128xf32>
    %23 = arith.mulf %22, %19 : vector<8x128xf32>
    %24 = arith.select %21, %19, %23 : vector<8x128xi1>, vector<8x128xf32>
    %c0_19 = arith.constant 0 : index
    %c0_20 = arith.constant 0 : index
    %25 = vector.load %arg8[%c0_19, %c0_20] : memref<128x2xf32, #tpu.memory_space<vmem>>, vector<128x2xf32>
    %cst_21 = arith.constant dense<0.000000e+00> : vector<8x2xf32>
    %26 = tpu.matmul %24, %25, %cst_21 {dimension_numbers = #tpu.dot_dimension_numbers<[1], [0], [0], [1], [0, 0, 1, 1], [], []>} : vector<8x128xf32>, vector<128x2xf32>, vector<8x2xf32> -> vector<8x2xf32>
    %c0_22 = arith.constant 0 : index
    %c0_23 = arith.constant 0 : index
    %27 = vector.load %arg9[%c0_22, %c0_23] : memref<1x2xf32, #tpu.memory_space<vmem>>, vector<1x2xf32>
    %28 = vector.broadcast %27 : vector<1x2xf32> to vector<8x2xf32>
    %29 = arith.addf %26, %28 : vector<8x2xf32>
    %c0_24 = arith.constant 0 : index
    %c0_25 = arith.constant 0 : index
    %30 = vector.load %arg10[%c0_24, %c0_25] : memref<8x2xf32, #tpu.memory_space<vmem>>, vector<8x2xf32>
    tpu.vector_store %arg10[%c0_24, %c0_25], %29 {strides = array<i32>} : memref<8x2xf32, #tpu.memory_space<vmem>>, vector<8x2xf32>,
    return
  }
  func.func @transform_0(%arg0: i32) -> (i32, i32) {
    %c0_i32 = arith.constant 0 : i32
    %c0_i32_0 = arith.constant 0 : i32
    return %arg0, %c0_i32 : i32, i32
  }
  func.func @transform_1(%arg0: i32) -> (i32, i32) {
    %c0_i32 = arith.constant 0 : i32
    %c0_i32_0 = arith.constant 0 : i32
    return %arg0, %c0_i32 : i32, i32
  }
  func.func @transform_2(%arg0: i32) -> (i32, i32) {
    %c0_i32 = arith.constant 0 : i32
    %c0_i32_0 = arith.constant 0 : i32
    %c0_i32_1 = arith.constant 0 : i32
    return %c0_i32, %c0_i32_0 : i32, i32
  }
  func.func @transform_3(%arg0: i32) -> (i32, i32) {
    %c0_i32 = arith.constant 0 : i32
    %c0_i32_0 = arith.constant 0 : i32
    %c0_i32_1 = arith.constant 0 : i32
    return %c0_i32, %c0_i32_0 : i32, i32
  }
  func.func @transform_4(%arg0: i32) -> (i32, i32) {
    %c0_i32 = arith.constant 0 : i32
    %c0_i32_0 = arith.constant 0 : i32
    %c0_i32_1 = arith.constant 0 : i32
    return %c0_i32, %c0_i32_0 : i32, i32
  }
  func.func @transform_5(%arg0: i32) -> (i32, i32) {
    %c0_i32 = arith.constant 0 : i32
    %c0_i32_0 = arith.constant 0 : i32
    %c0_i32_1 = arith.constant 0 : i32
    return %c0_i32, %c0_i32_0 : i32, i32
  }
  func.func @transform_6(%arg0: i32) -> (i32, i32) {
    %c0_i32 = arith.constant 0 : i32
    %c0_i32_0 = arith.constant 0 : i32
    %c0_i32_1 = arith.constant 0 : i32
    return %c0_i32, %c0_i32_0 : i32, i32
  }
  func.func @transform_7(%arg0: i32) -> (i32, i32) {
    %c0_i32 = arith.constant 0 : i32
    %c0_i32_0 = arith.constant 0 : i32
    %c0_i32_1 = arith.constant 0 : i32
    return %c0_i32, %c0_i32_0 : i32, i32
  }
  func.func @transform_8(%arg0: i32) -> (i32, i32) {
    %c0_i32 = arith.constant 0 : i32
    %c0_i32_0 = arith.constant 0 : i32
    %c0_i32_1 = arith.constant 0 : i32
    return %c0_i32, %c0_i32_0 : i32, i32
  }
  func.func @transform_9(%arg0: i32) -> (i32, i32) {
    %c0_i32 = arith.constant 0 : i32
    %c0_i32_0 = arith.constant 0 : i32
    return %arg0, %c0_i32 : i32, i32
  }
}

</mosaic_0001>

<llo_original>
// kernel: tpu_custom_call.1
$region0: #{tpu_custom_call.1}
  #allocation0 [shape = 'u32[]', space=smem, size = 0x4, offset = 0x4, fixed_abs, tag = 'smem constant byte address 0x4 - core index']
  #allocation1 [shape = 'u32[144,128]{1,0:T(1,128)}', space=vmem, size = 0x12000, scoped, tag = 'internal scratch']
  %s0 = inlined_call_operand.hbm [shape: f32[8,12], index: 0, kind: input, shape index: {}]
  %s1 = inlined_call_operand.vmem [shape: f32[8,4], index: 1, kind: input, shape index: {}]
  %s2 = inlined_call_operand.vmem [shape: f32[12,128], index: 2, kind: input, shape index: {}]
  %s3 = inlined_call_operand.vmem [shape: f32[4,128], index: 3, kind: input, shape index: {}]
  %s4 = inlined_call_operand.vmem [shape: f32[1,128], index: 4, kind: input, shape index: {}]
  %s5 = inlined_call_operand.vmem [shape: f32[128,128], index: 5, kind: input, shape index: {}]
  %s6 = inlined_call_operand.vmem [shape: f32[1,128], index: 6, kind: input, shape index: {}]
  %s7 = inlined_call_operand.vmem [shape: f32[128,2], index: 7, kind: input, shape index: {}]
  %s8 = inlined_call_operand.vmem [shape: f32[1,2], index: 8, kind: input, shape index: {}]
  %s9 = inlined_call_operand.vmem [shape: f32[8,2], index: 9, kind: output, shape index: {}]
  %s10 = sld [smem:[#allocation0]]
  $region50: #{tpu_custom_call.1} parent=0
    _
  %s12 = ssub.s32 1, %s10
  %s13 = scalar_select 0, %s12, %s10
  $region1: #{tpu_custom_call.1} parent=0
    #allocation2 [shape = 'u8[4096]{0}', space=vmem, size = 0x1000, scoped, tag = 'input window, operand 0, single buffered']
    #allocation3 [shape = 's32[1]{0}', space=sflag, size = 0x4, scoped, tag = 'scoped memory for tpu_custom_call.1']
    %14 = vsyncpa [#allocation3], 0
    // Predicated region
    $region2: #{tpu_custom_call.1} parent=1 // pred_check
      _
    $region3: #{tpu_custom_call.1} parent=1 // pred_check_branch
      %16 = sbr.rel (0) target = $region5
    $region4: #{tpu_custom_call.1} parent=1 // pred_region
      %s18 = ssub.s32 128, 128
      %19 = vsyncadd [#allocation3], %s18
      %s21 = sshll.u32 [#allocation2], 4
      %s22 = int_to_ptr.vmem [resolvable:$true] %s21
      %24 = dma.hbm_to_vmem [thread:$0]  %s0, 128, %s22, [#allocation3]
    $region5: #{tpu_custom_call.1} parent=1 // pred_fallthru
      _
    // Predicated region
    $region6: #{tpu_custom_call.1} parent=1 // pred_check
      _
    $region7: #{tpu_custom_call.1} parent=1 // pred_check_branch
      %26 = sbr.rel (0) target = $region9
    $region8: #{tpu_custom_call.1} parent=1 // pred_region
      _
    $region9: #{tpu_custom_call.1} parent=1 // pred_fallthru
      _
    // Predicated region
    $region10: #{tpu_custom_call.1} parent=1 // pred_check
      _
    $region11: #{tpu_custom_call.1} parent=1 // pred_check_branch
      %28 = sbr.rel (0) target = $region13
    $region12: #{tpu_custom_call.1} parent=1 // pred_region
      _
    $region13: #{tpu_custom_call.1} parent=1 // pred_fallthru
      _
    // Predicated region
    $region14: #{tpu_custom_call.1} parent=1 // pred_check
      _
    $region15: #{tpu_custom_call.1} parent=1 // pred_check_branch
      %30 = sbr.rel (0) target = $region17
    $region16: #{tpu_custom_call.1} parent=1 // pred_region
      _
    $region17: #{tpu_custom_call.1} parent=1 // pred_fallthru
      _
    // Predicated region
    $region18: #{tpu_custom_call.1} parent=1 // pred_check
      _
    $region19: #{tpu_custom_call.1} parent=1 // pred_check_branch
      %32 = sbr.rel (0) target = $region21
    $region20: #{tpu_custom_call.1} parent=1 // pred_region
      _
    $region21: #{tpu_custom_call.1} parent=1 // pred_fallthru
      _
    // Predicated region
    $region22: #{tpu_custom_call.1} parent=1 // pred_check
      _
    $region23: #{tpu_custom_call.1} parent=1 // pred_check_branch
      %34 = sbr.rel (0) target = $region25
    $region24: #{tpu_custom_call.1} parent=1 // pred_region
      _
    $region25: #{tpu_custom_call.1} parent=1 // pred_fallthru
      _
    // Predicated region
    $region26: #{tpu_custom_call.1} parent=1 // pred_check
      _
    $region27: #{tpu_custom_call.1} parent=1 // pred_check_branch
      %36 = sbr.rel (0) target = $region29
    $region28: #{tpu_custom_call.1} parent=1 // pred_region
      _
    $region29: #{tpu_custom_call.1} parent=1 // pred_fallthru
      _
    // Predicated region
    $region30: #{tpu_custom_call.1} parent=1 // pred_check
      _
    $region31: #{tpu_custom_call.1} parent=1 // pred_check_branch
      %38 = sbr.rel (0) target = $region33
    $region32: #{tpu_custom_call.1} parent=1 // pred_region
      _
    $region33: #{tpu_custom_call.1} parent=1 // pred_fallthru
      _
    // Predicated region
    $region34: #{tpu_custom_call.1} parent=1 // pred_check
      _
    $region35: #{tpu_custom_call.1} parent=1 // pred_check_branch
      %40 = sbr.rel (0) target = $region37
    $region36: #{tpu_custom_call.1} parent=1 // pred_region
      _
    $region37: #{tpu_custom_call.1} parent=1 // pred_fallthru
      _
    // Predicated region
    $region38: #{tpu_custom_call.1} parent=1 // pred_check
      _
    $region39: #{tpu_custom_call.1} parent=1 // pred_check_branch
      %42 = sbr.rel (0) target = $region41
    $region40: #{tpu_custom_call.1} parent=1 // pred_region
      %43 = dma.done [#allocation3], 128
    $region41: #{tpu_custom_call.1} parent=1 // pred_fallthru
      _
    %v44 = vld [vmem:[#allocation2] sm:$0xff]
    %v45 = vld [vmem:[%s2] sm:$0xff]
    %v46 = vld [vmem:[%s2 + $0x8] sm:$0xf]
    %v47 = vld [vmem:[%s1] sm:$0xff]
    %v48 = vld [vmem:[%s3] sm:$0xf]
    %vm49 = vcmask 31744
    %v51 = vsel %vm49, %v47, 0
    %vm53 = vcmask 1043456
    %v55 = vsel %vm53, %v48, 0
    %57 = vmatprep.subr.mxu0 0.0
    %58 = vmatpush1.msra.mxu0 0.0
    %59 = vmatprep.subr.mxu0 0.0
    %60 = vmatpush1.msra.mxu0 0.0
    %61 = vmatprep.subr.mxu0 0.0
    %62 = vmatpush1.msra.mxu0 0.0
    %63 = vmatprep.subr.mxu0 0.0
    %64 = vmatpush1.msra.mxu0 0.0
    %65 = vmatprep.subr.mxu0 0.0
    %66 = vmatpush1.msra.mxu0 0.0
    %67 = vmatprep.subr.mxu0 0.0
    %68 = vmatpush1.msra.mxu0 0.0
    %69 = vmatprep.subr.mxu0 0.0
    %70 = vmatpush1.msra.mxu0 0.0
    %71 = vmatprep.subr.mxu0 0.0
    %72 = vmatpush1.msra.mxu0 0.0
    %73 = vmatprep.subr.mxu0 0.0
    %74 = vmatpush1.msra.mxu0 0.0
    %75 = vmatprep.subr.mxu0 0.0
    %76 = vmatpush1.msra.mxu0 0.0
    %77 = vmatprep.subr.mxu0 0.0
    %78 = vmatpush1.msra.mxu0 0.0
    %79 = vmatprep.subr.mxu0 0.0
    %80 = vmatpush1.msra.mxu0 0.0
    %81 = vmatprep.subr.mxu0 0.0
    %82 = vmatpush1.msra.mxu0 0.0
    %83 = vmatprep.subr.mxu0 0.0
    %84 = vmatpush1.msra.mxu0 0.0
    %85 = vmatprep.subr.mxu0 0.0
    %86 = vmatpush1.msra.mxu0 0.0
    %87 = vmatprep.subr.mxu0 0.0
    %88 = vmatpush1.msra.mxu0 %v55
    %89 = vmatprep.subr.mxu0 0.0
    %90 = vmatpush2.msra.mxu0 0.0
    %91 = vmatprep.subr.mxu0 0.0
    %92 = vmatpush2.msra.mxu0 0.0
    %93 = vmatprep.subr.mxu0 0.0
    %94 = vmatpush2.msra.mxu0 0.0
    %95 = vmatprep.subr.mxu0 0.0
    %96 = vmatpush2.msra.mxu0 0.0
    %97 = vmatprep.subr.mxu0 0.0
    %98 = vmatpush2.msra.mxu0 0.0
    %99 = vmatprep.subr.mxu0 0.0
    %100 = vmatpush2.msra.mxu0 0.0
    %101 = vmatprep.subr.mxu0 0.0
    %102 = vmatpush2.msra.mxu0 0.0
    %103 = vmatprep.subr.mxu0 0.0
    %104 = vmatpush2.msra.mxu0 0.0
    %105 = vmatprep.subr.mxu0 0.0
    %106 = vmatpush2.msra.mxu0 0.0
    %107 = vmatprep.subr.mxu0 0.0
    %108 = vmatpush2.msra.mxu0 0.0
    %109 = vmatprep.subr.mxu0 0.0
    %110 = vmatpush2.msra.mxu0 0.0
    %111 = vmatprep.subr.mxu0 0.0
    %112 = vmatpush2.msra.mxu0 0.0
    %113 = vmatprep.subr.mxu0 0.0
    %114 = vmatpush2.msra.mxu0 0.0
    %115 = vmatprep.subr.mxu0 0.0
    %116 = vmatpush2.msra.mxu0 0.0
    %117 = vmatprep.subr.mxu0 0.0
    %118 = vmatpush2.msra.mxu0 0.0
    %119 = vmatprep.subr.mxu0 0.0
    %120 = vmatpush2.msra.mxu0 0.0
    %121 = vmatprep.mubr.f32.mxu0 0.0
    %122 = vmatmul.mubr.f32.gmra.mxu0 %v51
    %v123 = vpop.f32.mrf.mxu0
    %v124 = vadd.f32 0.0, %v123
    %v125 = vpop.f32.mrf.mxu0
    %126 = vdwg.mxu0
    %vm127 = vcmask 97280
    %v129 = vsel %vm127, %v44, 0
    %v132 = vsel %vm53, %v46, 0
    %134 = vmatprep.subr.mxu0 0.0
    %135 = vmatpush1.msra.mxu0 0.0
    %136 = vmatprep.subr.mxu0 0.0
    %137 = vmatpush1.msra.mxu0 0.0
    %138 = vmatprep.subr.mxu0 0.0
    %139 = vmatpush1.msra.mxu0 0.0
    %140 = vmatprep.subr.mxu0 0.0
    %141 = vmatpush1.msra.mxu0 0.0
    %142 = vmatprep.subr.mxu0 0.0
    %143 = vmatpush1.msra.mxu0 0.0
    %144 = vmatprep.subr.mxu0 0.0
    %145 = vmatpush1.msra.mxu0 0.0
    %146 = vmatprep.subr.mxu0 0.0
    %147 = vmatpush1.msra.mxu0 0.0
    %148 = vmatprep.subr.mxu0 0.0
    %149 = vmatpush1.msra.mxu0 0.0
    %150 = vmatprep.subr.mxu0 0.0
    %151 = vmatpush1.msra.mxu0 0.0
    %152 = vmatprep.subr.mxu0 0.0
    %153 = vmatpush1.msra.mxu0 0.0
    %154 = vmatprep.subr.mxu0 0.0
    %155 = vmatpush1.msra.mxu0 0.0
    %156 = vmatprep.subr.mxu0 0.0
    %157 = vmatpush1.msra.mxu0 0.0
    %158 = vmatprep.subr.mxu0 0.0
    %159 = vmatpush1.msra.mxu0 0.0
    %160 = vmatprep.subr.mxu0 0.0
    %161 = vmatpush1.msra.mxu0 0.0
    %162 = vmatprep.subr.mxu0 0.0
    %163 = vmatpush1.msra.mxu0 %v132
    %164 = vmatprep.subr.mxu0 0.0
    %165 = vmatpush1.msra.mxu0 %v45
    %166 = vmatprep.subr.mxu0 0.0
    %167 = vmatpush2.msra.mxu0 0.0
    %168 = vmatprep.subr.mxu0 0.0
    %169 = vmatpush2.msra.mxu0 0.0
    %170 = vmatprep.subr.mxu0 0.0
    %171 = vmatpush2.msra.mxu0 0.0
    %172 = vmatprep.subr.mxu0 0.0
    %173 = vmatpush2.msra.mxu0 0.0
    %174 = vmatprep.subr.mxu0 0.0
    %175 = vmatpush2.msra.mxu0 0.0
    %176 = vmatprep.subr.mxu0 0.0
    %177 = vmatpush2.msra.mxu0 0.0
    %178 = vmatprep.subr.mxu0 0.0
    %179 = vmatpush2.msra.mxu0 0.0
    %180 = vmatprep.subr.mxu0 0.0
    %181 = vmatpush2.msra.mxu0 0.0
    %182 = vmatprep.subr.mxu0 0.0
    %183 = vmatpush2.msra.mxu0 0.0
    %184 = vmatprep.subr.mxu0 0.0
    %185 = vmatpush2.msra.mxu0 0.0
    %186 = vmatprep.subr.mxu0 0.0
    %187 = vmatpush2.msra.mxu0 0.0
    %188 = vmatprep.subr.mxu0 0.0
    %189 = vmatpush2.msra.mxu0 0.0
    %190 = vmatprep.subr.mxu0 0.0
    %191 = vmatpush2.msra.mxu0 0.0
    %192 = vmatprep.subr.mxu0 0.0
    %193 = vmatpush2.msra.mxu0 0.0
    %194 = vmatprep.subr.mxu0 0.0
    %195 = vmatpush2.msra.mxu0 0.0
    %196 = vmatprep.subr.mxu0 0.0
    %197 = vmatpush2.msra.mxu0 0.0
    %198 = vmatprep.mubr.f32.mxu0 0.0
    %199 = vmatmul.mubr.f32.gmra.mxu0 %v129
    %v200 = vpop.f32.mrf.mxu0
    %v201 = vadd.f32 %v124, %v200
    %v202 = vpop.f32.mrf.mxu0
    %203 = vdwg.mxu0
    %v204 = vld [vmem:[%s4] sm:$0x1]
    %v206 = vlaneseq
    %v207 = vshrl.u32 %v206, 7
    %v208 = vsub.s32 0, %v207
    %v209 = vrot.slane %v204, %v208
    %v211 = vadd.f32 %v201, %v209
    %vm212 = vcmp.gt.f32.partialorder %v211, 0.0
    %v213 = vmul.f32 %v211, 0.01
    %v214 = vsel %vm212, %v211, %v213
    %v215 = vld [vmem:[%s5] sm:$0xff]
    %v216 = vld [vmem:[%s5 + $0x8] sm:$0xff]
    %v217 = vld [vmem:[%s5 + $0x10] sm:$0xff]
    %v218 = vld [vmem:[%s5 + $0x18] sm:$0xff]
    %v219 = vld [vmem:[%s5 + $0x20] sm:$0xff]
    %v220 = vld [vmem:[%s5 + $0x28] sm:$0xff]
    %v221 = vld [vmem:[%s5 + $0x30] sm:$0xff]
    %v222 = vld [vmem:[%s5 + $0x38] sm:$0xff]
    %v223 = vld [vmem:[%s5 + $0x40] sm:$0xff]
    %v224 = vld [vmem:[%s5 + $0x48] sm:$0xff]
    %v225 = vld [vmem:[%s5 + $0x50] sm:$0xff]
    %v226 = vld [vmem:[%s5 + $0x58] sm:$0xff]
    %v227 = vld [vmem:[%s5 + $0x60] sm:$0xff]
    %v228 = vld [vmem:[%s5 + $0x68] sm:$0xff]
    %v229 = vld [vmem:[%s5 + $0x70] sm:$0xff]
    %v230 = vld [vmem:[%s5 + $0x78] sm:$0xff]
    %v231 = vld [vmem:[%s6] sm:$0x1]
    %v233 = vlaneseq
    %v234 = vshrl.u32 %v233, 7
    %v235 = vsub.s32 0, %v234
    %v236 = vrot.slane %v231, %v235
    %238 = vmatprep.subr.mxu0 0.0
    %239 = vmatpush1.msra.mxu0 %v230
    %240 = vmatprep.subr.mxu0 0.0
    %241 = vmatpush1.msra.mxu0 %v229
    %242 = vmatprep.subr.mxu0 0.0
    %243 = vmatpush1.msra.mxu0 %v228
    %244 = vmatprep.subr.mxu0 0.0
    %245 = vmatpush1.msra.mxu0 %v227
    %246 = vmatprep.subr.mxu0 0.0
    %247 = vmatpush1.msra.mxu0 %v226
    %248 = vmatprep.subr.mxu0 0.0
    %249 = vmatpush1.msra.mxu0 %v225
    %250 = vmatprep.subr.mxu0 0.0
    %251 = vmatpush1.msra.mxu0 %v224
    %252 = vmatprep.subr.mxu0 0.0
    %253 = vmatpush1.msra.mxu0 %v223
    %254 = vmatprep.subr.mxu0 0.0
    %255 = vmatpush1.msra.mxu0 %v222
    %256 = vmatprep.subr.mxu0 0.0
    %257 = vmatpush1.msra.mxu0 %v221
    %258 = vmatprep.subr.mxu0 0.0
    %259 = vmatpush1.msra.mxu0 %v220
    %260 = vmatprep.subr.mxu0 0.0
    %261 = vmatpush1.msra.mxu0 %v219
    %262 = vmatprep.subr.mxu0 0.0
    %263 = vmatpush1.msra.mxu0 %v218
    %264 = vmatprep.subr.mxu0 0.0
    %265 = vmatpush1.msra.mxu0 %v217
    %266 = vmatprep.subr.mxu0 0.0
    %267 = vmatpush1.msra.mxu0 %v216
    %268 = vmatprep.subr.mxu0 0.0
    %269 = vmatpush1.msra.mxu0 %v215
    %270 = vmatprep.subr.mxu0 0.0
    %271 = vmatpush2.msra.mxu0 0.0
    %272 = vmatprep.subr.mxu0 0.0
    %273 = vmatpush2.msra.mxu0 0.0
    %274 = vmatprep.subr.mxu0 0.0
    %275 = vmatpush2.msra.mxu0 0.0
    %276 = vmatprep.subr.mxu0 0.0
    %277 = vmatpush2.msra.mxu0 0.0
    %278 = vmatprep.subr.mxu0 0.0
    %279 = vmatpush2.msra.mxu0 0.0
    %280 = vmatprep.subr.mxu0 0.0
    %281 = vmatpush2.msra.mxu0 0.0
    %282 = vmatprep.subr.mxu0 0.0
    %283 = vmatpush2.msra.mxu0 0.0
    %284 = vmatprep.subr.mxu0 0.0
    %285 = vmatpush2.msra.mxu0 0.0
    %286 = vmatprep.subr.mxu0 0.0
    %287 = vmatpush2.msra.mxu0 0.0
    %288 = vmatprep.subr.mxu0 0.0
    %289 = vmatpush2.msra.mxu0 0.0
    %290 = vmatprep.subr.mxu0 0.0
    %291 = vmatpush2.msra.mxu0 0.0
    %292 = vmatprep.subr.mxu0 0.0
    %293 = vmatpush2.msra.mxu0 0.0
    %294 = vmatprep.subr.mxu0 0.0
    %295 = vmatpush2.msra.mxu0 0.0
    %296 = vmatprep.subr.mxu0 0.0
    %297 = vmatpush2.msra.mxu0 0.0
    %298 = vmatprep.subr.mxu0 0.0
    %299 = vmatpush2.msra.mxu0 0.0
    %300 = vmatprep.subr.mxu0 0.0
    %301 = vmatpush2.msra.mxu0 0.0
    %302 = vmatprep.mubr.f32.mxu0 0.0
    %303 = vmatmul.mubr.f32.gmra.mxu0 %v214
    %v304 = vpop.f32.mrf.mxu0
    %v305 = vadd.f32 %v236, %v304
    %v306 = vpop.f32.mrf.mxu0
    %307 = vdwg.mxu0
    %vm308 = vcmp.gt.f32.partialorder %v305, 0.0
    %v309 = vmul.f32 %v305, 0.01
    %v310 = vsel %vm308, %v305, %v309
    %v311 = vld [vmem:[%s7] sm:$0xff]
    %v312 = vld [vmem:[%s7 + $0x8] sm:$0xff]
    %v313 = vld [vmem:[%s7 + $0x10] sm:$0xff]
    %v314 = vld [vmem:[%s7 + $0x18] sm:$0xff]
    %v315 = vld [vmem:[%s7 + $0x20] sm:$0xff]
    %v316 = vld [vmem:[%s7 + $0x28] sm:$0xff]
    %v317 = vld [vmem:[%s7 + $0x30] sm:$0xff]
    %v318 = vld [vmem:[%s7 + $0x38] sm:$0xff]
    %v319 = vld [vmem:[%s7 + $0x40] sm:$0xff]
    %v320 = vld [vmem:[%s7 + $0x48] sm:$0xff]
    %v321 = vld [vmem:[%s7 + $0x50] sm:$0xff]
    %v322 = vld [vmem:[%s7 + $0x58] sm:$0xff]
    %v323 = vld [vmem:[%s7 + $0x60] sm:$0xff]
    %v324 = vld [vmem:[%s7 + $0x68] sm:$0xff]
    %v325 = vld [vmem:[%s7 + $0x70] sm:$0xff]
    %v326 = vld [vmem:[%s7 + $0x78] sm:$0xff]
    %v327 = vld [vmem:[%s8] sm:$0x1]
    %v329 = vlaneseq
    %v330 = vshrl.u32 %v329, 7
    %v331 = vsub.s32 0, %v330
    %v332 = vrot.slane %v327, %v331
    %334 = vmatprep.subr.mxu0 0.0
    %335 = vmatpush1.msra.mxu0 %v326
    %336 = vmatprep.subr.mxu0 0.0
    %337 = vmatpush1.msra.mxu0 %v325
    %338 = vmatprep.subr.mxu0 0.0
    %339 = vmatpush1.msra.mxu0 %v324
    %340 = vmatprep.subr.mxu0 0.0
    %341 = vmatpush1.msra.mxu0 %v323
    %342 = vmatprep.subr.mxu0 0.0
    %343 = vmatpush1.msra.mxu0 %v322
    %344 = vmatprep.subr.mxu0 0.0
    %345 = vmatpush1.msra.mxu0 %v321
    %346 = vmatprep.subr.mxu0 0.0
    %347 = vmatpush1.msra.mxu0 %v320
    %348 = vmatprep.subr.mxu0 0.0
    %349 = vmatpush1.msra.mxu0 %v319
    %350 = vmatprep.subr.mxu0 0.0
    %351 = vmatpush1.msra.mxu0 %v318
    %352 = vmatprep.subr.mxu0 0.0
    %353 = vmatpush1.msra.mxu0 %v317
    %354 = vmatprep.subr.mxu0 0.0
    %355 = vmatpush1.msra.mxu0 %v316
    %356 = vmatprep.subr.mxu0 0.0
    %357 = vmatpush1.msra.mxu0 %v315
    %358 = vmatprep.subr.mxu0 0.0
    %359 = vmatpush1.msra.mxu0 %v314
    %360 = vmatprep.subr.mxu0 0.0
    %361 = vmatpush1.msra.mxu0 %v313
    %362 = vmatprep.subr.mxu0 0.0
    %363 = vmatpush1.msra.mxu0 %v312
    %364 = vmatprep.subr.mxu0 0.0
    %365 = vmatpush1.msra.mxu0 %v311
    %366 = vmatprep.subr.mxu0 0.0
    %367 = vmatpush2.msra.mxu0 0.0
    %368 = vmatprep.subr.mxu0 0.0
    %369 = vmatpush2.msra.mxu0 0.0
    %370 = vmatprep.subr.mxu0 0.0
    %371 = vmatpush2.msra.mxu0 0.0
    %372 = vmatprep.subr.mxu0 0.0
    %373 = vmatpush2.msra.mxu0 0.0
    %374 = vmatprep.subr.mxu0 0.0
    %375 = vmatpush2.msra.mxu0 0.0
    %376 = vmatprep.subr.mxu0 0.0
    %377 = vmatpush2.msra.mxu0 0.0
    %378 = vmatprep.subr.mxu0 0.0
    %379 = vmatpush2.msra.mxu0 0.0
    %380 = vmatprep.subr.mxu0 0.0
    %381 = vmatpush2.msra.mxu0 0.0
    %382 = vmatprep.subr.mxu0 0.0
    %383 = vmatpush2.msra.mxu0 0.0
    %384 = vmatprep.subr.mxu0 0.0
    %385 = vmatpush2.msra.mxu0 0.0
    %386 = vmatprep.subr.mxu0 0.0
    %387 = vmatpush2.msra.mxu0 0.0
    %388 = vmatprep.subr.mxu0 0.0
    %389 = vmatpush2.msra.mxu0 0.0
    %390 = vmatprep.subr.mxu0 0.0
    %391 = vmatpush2.msra.mxu0 0.0
    %392 = vmatprep.subr.mxu0 0.0
    %393 = vmatpush2.msra.mxu0 0.0
    %394 = vmatprep.subr.mxu0 0.0
    %395 = vmatpush2.msra.mxu0 0.0
    %396 = vmatprep.subr.mxu0 0.0
    %397 = vmatpush2.msra.mxu0 0.0
    %398 = vmatprep.mubr.f32.mxu0 0.0
    %399 = vmatmul.mubr.f32.gmra.mxu0 %v310
    %v400 = vpop.f32.mrf.mxu0
    %v401 = vadd.f32 %v332, %v400
    %v402 = vpop.f32.mrf.mxu0
    %403 = vdwg.mxu0
    %vm404 = vcmask 15360
    %405 = vst.msk [vmem:[%s9] sm:$0xff] %vm404, %v401
    // Predicated region
    $region42: #{tpu_custom_call.1} parent=1 // pred_check
      _
    $region43: #{tpu_custom_call.1} parent=1 // pred_check_branch
      %407 = sbr.rel (0) target = $region45
    $region44: #{tpu_custom_call.1} parent=1 // pred_region
      _
    $region45: #{tpu_custom_call.1} parent=1 // pred_fallthru
      _
    // Predicated region
    $region46: #{tpu_custom_call.1} parent=1 // pred_check
      _
    $region47: #{tpu_custom_call.1} parent=1 // pred_check_branch
      %409 = sbr.rel (0) target = $region49
    $region48: #{tpu_custom_call.1} parent=1 // pred_region
      _
    $region49: #{tpu_custom_call.1} parent=1 // pred_fallthru
      _
    %410 = vsyncpa [#allocation3], 1

</llo_original>
